<compile_context>
chip_gen: v7x
topology: tpu7x:2x2x1
jax: 0.10.0
libtpu: 0.0.40
codegen_flags: <defaults>
</compile_context>

<pallas_src>
import functools

import jax
import jax.numpy as jnp
from jax import lax
from jax.experimental import pallas as pl
from jax.experimental.pallas import tpu as pltpu

BLOCK_SIZE = 8                   # T (max sequence length)
NUM_EMBEDDING_DIMENSIONS = 32    # C, also head_size
VOCAB_SIZE = 65                  # V
LANE = 128                       # TPU lane width; logits padded to a multiple of this


def _bigram_fused_kernel(idx_ref, tok_ref, pos_ref, wqkv_ref, wlm_ref, blm_ref,
                         logits_ref):
    """One grid step = one block of batch elements.

    idx_ref    : (Bb*T, 1) int32   token ids for this batch block (flattened)
    tok_ref    : (Vv, C)   bf16    token embedding table
    pos_ref    : (T, C)    f32     position embedding table
    wqkv_ref   : (C, 3C)   bf16    fused [W_k | W_q | W_v]
    wlm_ref    : (C, Vpad) bf16    LM head weight, zero-padded to lane-dense Vpad
    blm_ref    : (1, Vpad) f32     LM head bias, zero-padded
    logits_ref : (Bb, T, Vpad) f32
    """
    T, C = pos_ref.shape
    Vv = tok_ref.shape[0]
    BT = idx_ref.shape[0]
    Bb = BT // T
    Vpad = logits_ref.shape[-1]
    compute_dtype = wqkv_ref.dtype  # bf16 operands, f32 accumulation

    # ---- token embedding gather as an exact one-hot matmul (MXU) ----
    ids = idx_ref[...]                                              # (BT, 1) int32
    vocab_iota = lax.broadcasted_iota(jnp.int32, (BT, Vv), 1)       # (BT, Vv)
    one_hot = (vocab_iota == ids).astype(compute_dtype)             # 0/1 -> exact select
    tok_emb = jnp.dot(one_hot, tok_ref[...],
                      preferred_element_type=jnp.float32)           # (BT, C) f32

    # position embeddings: f32 add (v5e has no bf16 VPU), then cast for the MXU
    x = tok_emb.reshape(Bb, T, C) + pos_ref[...][None, :, :]        # (Bb, T, C) f32
    x2 = x.reshape(BT, C).astype(compute_dtype)                     # (BT, C) bf16

    # ---- fused QKV projection: single MXU push with N = 3C ----
    qkv = jnp.dot(x2, wqkv_ref[...],
                  preferred_element_type=jnp.float32)               # (BT, 3C) f32
    k = qkv[:, :C].reshape(Bb, T, C).astype(compute_dtype)
    q = qkv[:, C:2 * C].reshape(Bb, T, C).astype(compute_dtype)
    v = qkv[:, 2 * C:].reshape(Bb, T, C).astype(compute_dtype)

    # ---- scaled dot-product attention (batched einsum, no explicit transpose) ----
    scale = float(C) ** -0.5
    scores = jnp.einsum('btc,bsc->bts', q, k,
                        preferred_element_type=jnp.float32) * scale  # (Bb, T, T) f32

    # causal (lower-triangular) mask with a large finite negative (no inf arithmetic)
    row = lax.broadcasted_iota(jnp.int32, (Bb, T, T), 1)
    col = lax.broadcasted_iota(jnp.int32, (Bb, T, T), 2)
    scores = jnp.where(col <= row, scores, -1e30)

    # numerically stable softmax, kept in f32; reciprocal on the EUP path
    scores = scores - jnp.max(scores, axis=-1, keepdims=True)
    p = jnp.exp(scores)
    p = p * pl.reciprocal(jnp.sum(p, axis=-1, keepdims=True), approx=True)

    attn = jnp.einsum('bts,bsc->btc', p.astype(compute_dtype), v,
                      preferred_element_type=jnp.float32)            # (Bb, T, C) f32

    # ---- LM head into a lane-dense (..., Vpad=128) output slab ----
    attn2 = attn.reshape(BT, C).astype(compute_dtype)
    logits = jnp.dot(attn2, wlm_ref[...],
                     preferred_element_type=jnp.float32) + blm_ref[...]   # (BT, Vpad)
    logits_ref[...] = logits.reshape(Bb, T, Vpad)


def _pick_batch_block(B):
    # Small batches: collapse to a single grid step (amortize ~0.35 us/step overhead).
    # Larger batches: keep >= 2 parallel steps so v7x's two TensorCores both get work.
    if B <= 8:
        return B
    for cand in (8, 4, 2, 1):
        if B % cand == 0:
            return cand
    return 1


@jax.jit
def bigram_forward_logits(idx, token_embedding, position_embedding,
                          w_key, w_query, w_value, w_lm, b_lm):
    """idx: (B, T) int32 token ids. Returns logits (B, T, V) float32."""
    B, T = idx.shape
    C = token_embedding.shape[1]
    V = w_lm.shape[1]
    Vpad = ((V + LANE - 1) // LANE) * LANE

    # one-time packing / padding / casting (outside the kernel, cheap under jit)
    w_qkv = jnp.concatenate([w_key, w_query, w_value], axis=1).astype(jnp.bfloat16)
    w_lm_pad = jnp.pad(w_lm, ((0, 0), (0, Vpad - V))).astype(jnp.bfloat16)
    b_lm_pad = jnp.pad(b_lm, ((0, 0), (0, Vpad - V))).astype(jnp.float32)
    tok_tbl = token_embedding.astype(jnp.bfloat16)
    pos_tbl = position_embedding.astype(jnp.float32)
    idx2 = idx.reshape(B * T, 1).astype(jnp.int32)

    Bb = _pick_batch_block(B)
    grid = (B // Bb,)
    Vv = tok_tbl.shape[0]

    padded_logits = pl.pallas_call(
        _bigram_fused_kernel,
        out_shape=jax.ShapeDtypeStruct((B, T, Vpad), jnp.float32),
        grid_spec=pltpu.PrefetchScalarGridSpec(
            num_scalar_prefetch=0,
            grid=grid,
            in_specs=[
                pl.BlockSpec((Bb * T, 1), lambda b: (b, 0)),      # idx (flattened)
                pl.BlockSpec((Vv, C), lambda b: (0, 0)),          # token table
                pl.BlockSpec((T, C), lambda b: (0, 0)),           # position table
                pl.BlockSpec((C, 3 * C), lambda b: (0, 0)),       # fused QKV weight
                pl.BlockSpec((C, Vpad), lambda b: (0, 0)),        # LM head weight (padded)
                pl.BlockSpec((1, Vpad), lambda b: (0, 0)),        # LM head bias (padded)
            ],
            out_specs=pl.BlockSpec((Bb, T, Vpad), lambda b: (b, 0, 0)),
        ),
        compiler_params=pltpu.CompilerParams(
            dimension_semantics=("parallel",)),
    )(idx2, tok_tbl, pos_tbl, w_qkv, w_lm_pad, b_lm_pad)

    # drop the zero-padded logit columns before anything consumes them (e.g. the loss)
    return padded_logits[:, :, :V]


def bigram_language_model_forward(idx, params, targets=None):
    """Mirrors BigramLanguageModel.forward: returns (logits, loss_or_None)."""
    B, T = idx.shape
    logits = bigram_forward_logits(
        idx,
        params["token_embedding"], params["position_embedding"],
        params["w_key"], params["w_query"], params["w_value"],
        params["w_lm"], params["b_lm"],
    )

    loss = None
    if targets is not None:
        # cross-entropy over flattened (B*T, V) — glue, plain JAX
        flat_logits = logits.reshape(B * T, -1)
        flat_targets = targets.reshape(B * T)
        logz = jax.nn.logsumexp(flat_logits, axis=-1)
        picked = jnp.take_along_axis(flat_logits, flat_targets[:, None], axis=-1)[:, 0]
        loss = jnp.mean(logz - picked)
    return logits, loss
    # TODO(synk): generate() (autoregressive torch.multinomial sampling loop) is host-side
    # control flow, not part of the forward pass; left unimplemented.


def init_params(key, vocab_size=VOCAB_SIZE, emb=NUM_EMBEDDING_DIMENSIONS,
                block_size=BLOCK_SIZE):
    """Deterministic synthetic init (shapes match the PyTorch module)."""
    ks = jax.random.split(key, 7)
    scale = 0.02
    return {
        "token_embedding": scale * jax.random.normal(ks[0], (vocab_size, emb), jnp.float32),
        "position_embedding": scale * jax.random.normal(ks[1], (block_size, emb), jnp.float32),
        # stored (in, out) == transpose of nn.Linear.weight
        "w_key": scale * jax.random.normal(ks[2], (emb, emb), jnp.float32),
        "w_query": scale * jax.random.normal(ks[3], (emb, emb), jnp.float32),
        "w_value": scale * jax.random.normal(ks[4], (emb, emb), jnp.float32),
        "w_lm": scale * jax.random.normal(ks[5], (emb, vocab_size), jnp.float32),
        "b_lm": scale * jax.random.normal(ks[6], (1, vocab_size), jnp.float32),
    }


def _reference_forward(idx, params):
    """Pure-JAX f32 reference (mirrors the PyTorch forward) for a sanity check."""
    B, T = idx.shape
    C = NUM_EMBEDDING_DIMENSIONS
    x = params["token_embedding"][idx] + params["position_embedding"][jnp.arange(T)][None]
    k = x @ params["w_key"]
    q = x @ params["w_query"]
    v = x @ params["w_value"]
    scores = jnp.einsum('btc,bsc->bts', q, k) * (C ** -0.5)
    mask = jnp.tril(jnp.ones((T, T), bool))
    scores = jnp.where(mask[None], scores, -jnp.inf)
    p = jax.nn.softmax(scores, axis=-1)
    attn = jnp.einsum('bts,bsc->btc', p, v)
    return attn @ params["w_lm"] + params["b_lm"][None]


if __name__ == "__main__":
    key = jax.random.PRNGKey(0)
    pkey, ikey, tkey = jax.random.split(key, 3)

    params = init_params(pkey)

    B, T = 2, BLOCK_SIZE
    idx = jax.random.randint(ikey, (B, T), 0, VOCAB_SIZE, dtype=jnp.int32)
    targets = jax.random.randint(tkey, (B, T), 0, VOCAB_SIZE, dtype=jnp.int32)

    logits, loss = bigram_language_model_forward(idx, params, targets)
    logits = jax.block_until_ready(logits)
    loss = jax.block_until_ready(loss)

    assert logits.shape == (B, T, VOCAB_SIZE)
    assert logits.dtype == jnp.float32
    assert bool(jnp.isfinite(loss))

    # numeric sanity check vs. pure-JAX f32 reference (bf16 matmul operands -> loose tol)
    ref = _reference_forward(idx, params)
    assert bool(jnp.allclose(logits, ref, atol=1e-2, rtol=5e-2))

    print("KERNEL_OK")
</pallas_src>

<mosaic_0001>
module attributes {stable_mosaic.version = 11 : i64} {
  func.func @_bigram_fused_kernel(%arg0: i32, %arg1: memref<16x1xi32, #tpu.memory_space<vmem>>, %arg2: memref<65x32xbf16, #tpu.memory_space<vmem>>, %arg3: memref<8x32xf32, #tpu.memory_space<vmem>>, %arg4: memref<32x96xbf16, #tpu.memory_space<vmem>>, %arg5: memref<32x128xbf16, #tpu.memory_space<vmem>>, %arg6: memref<1x128xf32, #tpu.memory_space<vmem>>, %arg7: memref<2x8x128xf32, #tpu.memory_space<vmem>>) attributes {dimension_semantics = [#tpu.dimension_semantics<parallel>], iteration_bounds = array<i64: 1>, scalar_prefetch = 0 : i64, scratch_operands = 0 : i64, tpu.core_type = #tpu.core_type<tc>, window_params = [{transform_indices = @transform_0, window_bounds = array<i64: 16, 1>}, {pipeline_mode = #tpu.pipeline_mode<synchronous>, transform_indices = @transform_1, window_bounds = array<i64: 65, 32>}, {pipeline_mode = #tpu.pipeline_mode<synchronous>, transform_indices = @transform_2, window_bounds = array<i64: 8, 32>}, {pipeline_mode = #tpu.pipeline_mode<synchronous>, transform_indices = @transform_3, window_bounds = array<i64: 32, 96>}, {pipeline_mode = #tpu.pipeline_mode<synchronous>, transform_indices = @transform_4, window_bounds = array<i64: 32, 128>}, {pipeline_mode = #tpu.pipeline_mode<synchronous>, transform_indices = @transform_5, window_bounds = array<i64: 1, 128>}, {transform_indices = @transform_6, window_bounds = array<i64: 2, 8, 128>}]} {
    %c0 = arith.constant 0 : index
    %c0_0 = arith.constant 0 : index
    %0 = vector.load %arg1[%c0, %c0_0] : memref<16x1xi32, #tpu.memory_space<vmem>>, vector<16x1xi32>
    %1 = tpu.iota {dimensions = array<i32: 1>} : vector<16x65xi32>
    %2 = vector.broadcast %0 : vector<16x1xi32> to vector<16x65xi32>
    %3 = arith.cmpi eq, %1, %2 : vector<16x65xi32>
    %4 = arith.extui %3 : vector<16x65xi1> to vector<16x65xi32>
    %5 = arith.sitofp %4 : vector<16x65xi32> to vector<16x65xf32>
    %6 = arith.truncf %5 : vector<16x65xf32> to vector<16x65xbf16>
    %c0_1 = arith.constant 0 : index
    %c0_2 = arith.constant 0 : index
    %7 = vector.load %arg2[%c0_1, %c0_2] : memref<65x32xbf16, #tpu.memory_space<vmem>>, vector<65x32xbf16>
    %cst = arith.constant dense<0.000000e+00> : vector<16x32xf32>
    %8 = tpu.matmul %6, %7, %cst {dimension_numbers = #tpu.dot_dimension_numbers<[1], [0], [0], [1], [0, 0, 1, 1], [], []>} : vector<16x65xbf16>, vector<65x32xbf16>, vector<16x32xf32> -> vector<16x32xf32>
    %9 = vector.shape_cast %8 : vector<16x32xf32> to vector<2x8x32xf32>
    %c0_3 = arith.constant 0 : index
    %c0_4 = arith.constant 0 : index
    %10 = vector.load %arg3[%c0_3, %c0_4] : memref<8x32xf32, #tpu.memory_space<vmem>>, vector<8x32xf32>
    %11 = vector.shape_cast %10 : vector<8x32xf32> to vector<1x8x32xf32>
    %12 = vector.broadcast %11 : vector<1x8x32xf32> to vector<2x8x32xf32>
    %13 = arith.addf %9, %12 : vector<2x8x32xf32>
    %14 = vector.shape_cast %13 : vector<2x8x32xf32> to vector<16x32xf32>
    %15 = arith.truncf %14 : vector<16x32xf32> to vector<16x32xbf16>
    %c0_5 = arith.constant 0 : index
    %c0_6 = arith.constant 0 : index
    %16 = vector.load %arg4[%c0_5, %c0_6] : memref<32x96xbf16, #tpu.memory_space<vmem>>, vector<32x96xbf16>
    %cst_7 = arith.constant dense<0.000000e+00> : vector<16x96xf32>
    %17 = tpu.matmul %15, %16, %cst_7 {dimension_numbers = #tpu.dot_dimension_numbers<[1], [0], [0], [1], [0, 0, 1, 1], [], []>} : vector<16x32xbf16>, vector<32x96xbf16>, vector<16x96xf32> -> vector<16x96xf32>
    %18 = vector.extract_strided_slice %17 {offsets = [0, 0], sizes = [16, 32], strides = [1, 1]} : vector<16x96xf32> to vector<16x32xf32>
    %19 = vector.shape_cast %18 : vector<16x32xf32> to vector<2x8x32xf32>
    %20 = arith.truncf %19 : vector<2x8x32xf32> to vector<2x8x32xbf16>
    %21 = vector.extract_strided_slice %17 {offsets = [0, 32], sizes = [16, 32], strides = [1, 1]} : vector<16x96xf32> to vector<16x32xf32>
    %22 = vector.shape_cast %21 : vector<16x32xf32> to vector<2x8x32xf32>
    %23 = arith.truncf %22 : vector<2x8x32xf32> to vector<2x8x32xbf16>
    %24 = vector.extract_strided_slice %17 {offsets = [0, 64], sizes = [16, 32], strides = [1, 1]} : vector<16x96xf32> to vector<16x32xf32>
    %25 = vector.shape_cast %24 : vector<16x32xf32> to vector<2x8x32xf32>
    %26 = arith.truncf %25 : vector<2x8x32xf32> to vector<2x8x32xbf16>
    "tpu.trace_start"() <{level = 10 : i32, message = "btc,bsc->bts"}> : () -> ()
    %cst_8 = arith.constant dense<0.000000e+00> : vector<2x8x8xf32>
    %27 = tpu.matmul %23, %20, %cst_8 {dimension_numbers = #tpu.dot_dimension_numbers<[2], [2], [1], [1], [0, 0, 0, 1, 1, 1], [0], [0]>} : vector<2x8x32xbf16>, vector<2x8x32xbf16>, vector<2x8x8xf32> -> vector<2x8x8xf32>
    "tpu.trace_stop"() : () -> ()
    %cst_9 = arith.constant 0.176776692 : f32
    %28 = vector.broadcast %cst_9 : f32 to vector<2x8x8xf32>
    %29 = arith.mulf %27, %28 : vector<2x8x8xf32>
    %30 = tpu.iota {dimensions = array<i32: 1>} : vector<2x8x8xi32>
    %31 = tpu.iota {dimensions = array<i32: 2>} : vector<2x8x8xi32>
    %32 = arith.cmpi sle, %31, %30 : vector<2x8x8xi32>
    %cst_10 = arith.constant -1.000000e+30 : f32
    %33 = vector.broadcast %cst_10 : f32 to vector<2x8x8xf32>
    %34 = arith.select %32, %29, %33 : vector<2x8x8xi1>, vector<2x8x8xf32>
    %cst_11 = arith.constant dense<0xFF800000> : vector<2x8xf32>
    %35 = vector.multi_reduction <maximumf>, %34, %cst_11 [2] : vector<2x8x8xf32> to vector<2x8xf32>
    %36 = vector.shape_cast %35 : vector<2x8xf32> to vector<2x8x1xf32>
    %37 = vector.broadcast %36 : vector<2x8x1xf32> to vector<2x8x8xf32>
    %38 = arith.subf %34, %37 : vector<2x8x8xf32>
    %39 = math.exp %38 : vector<2x8x8xf32>
    %cst_12 = arith.constant dense<0.000000e+00> : vector<2x8xf32>
    %40 = vector.multi_reduction <add>, %39, %cst_12 [2] : vector<2x8x8xf32> to vector<2x8xf32>
    %41 = vector.shape_cast %40 : vector<2x8xf32> to vector<2x8x1xf32>
    %42 = tpu.reciprocal %41 {approx = true} : vector<2x8x1xf32> -> vector<2x8x1xf32>
    %43 = vector.broadcast %42 : vector<2x8x1xf32> to vector<2x8x8xf32>
    %44 = arith.mulf %39, %43 : vector<2x8x8xf32>
    %45 = arith.truncf %44 : vector<2x8x8xf32> to vector<2x8x8xbf16>
    "tpu.trace_start"() <{level = 10 : i32, message = "bts,bsc->btc"}> : () -> ()
    %cst_13 = arith.constant dense<0.000000e+00> : vector<2x8x32xf32>
    %46 = tpu.matmul %45, %26, %cst_13 {dimension_numbers = #tpu.dot_dimension_numbers<[2], [1], [1], [2], [0, 0, 0, 1, 1, 2], [0], [0]>} : vector<2x8x8xbf16>, vector<2x8x32xbf16>, vector<2x8x32xf32> -> vector<2x8x32xf32>
    "tpu.trace_stop"() : () -> ()
    %47 = vector.shape_cast %46 : vector<2x8x32xf32> to vector<16x32xf32>
    %48 = arith.truncf %47 : vector<16x32xf32> to vector<16x32xbf16>
    %c0_14 = arith.constant 0 : index
    %c0_15 = arith.constant 0 : index
    %49 = vector.load %arg5[%c0_14, %c0_15] : memref<32x128xbf16, #tpu.memory_space<vmem>>, vector<32x128xbf16>
    %cst_16 = arith.constant dense<0.000000e+00> : vector<16x128xf32>
    %50 = tpu.matmul %48, %49, %cst_16 {dimension_numbers = #tpu.dot_dimension_numbers<[1], [0], [0], [1], [0, 0, 1, 1], [], []>} : vector<16x32xbf16>, vector<32x128xbf16>, vector<16x128xf32> -> vector<16x128xf32>
    %c0_17 = arith.constant 0 : index
    %c0_18 = arith.constant 0 : index
    %51 = vector.load %arg6[%c0_17, %c0_18] : memref<1x128xf32, #tpu.memory_space<vmem>>, vector<1x128xf32>
    %52 = vector.broadcast %51 : vector<1x128xf32> to vector<16x128xf32>
    %53 = arith.addf %50, %52 : vector<16x128xf32>
    %54 = vector.shape_cast %53 : vector<16x128xf32> to vector<2x8x128xf32>
    %c0_19 = arith.constant 0 : index
    %c0_20 = arith.constant 0 : index
    %c0_21 = arith.constant 0 : index
    %55 = vector.load %arg7[%c0_19, %c0_20, %c0_21] : memref<2x8x128xf32, #tpu.memory_space<vmem>>, vector<2x8x128xf32>
    tpu.vector_store %arg7[%c0_19, %c0_20, %c0_21], %54 {strides = array<i32>} : memref<2x8x128xf32, #tpu.memory_space<vmem>>, vector<2x8x128xf32>,
    return
  }
  func.func @transform_0(%arg0: i32) -> (i32, i32) {
    %c0_i32 = arith.constant 0 : i32
    %c0_i32_0 = arith.constant 0 : i32
    return %arg0, %c0_i32 : i32, i32
  }
  func.func @transform_1(%arg0: i32) -> (i32, i32) {
    %c0_i32 = arith.constant 0 : i32
    %c0_i32_0 = arith.constant 0 : i32
    %c0_i32_1 = arith.constant 0 : i32
    return %c0_i32, %c0_i32_0 : i32, i32
  }
  func.func @transform_2(%arg0: i32) -> (i32, i32) {
    %c0_i32 = arith.constant 0 : i32
    %c0_i32_0 = arith.constant 0 : i32
    %c0_i32_1 = arith.constant 0 : i32
    return %c0_i32, %c0_i32_0 : i32, i32
  }
  func.func @transform_3(%arg0: i32) -> (i32, i32) {
    %c0_i32 = arith.constant 0 : i32
    %c0_i32_0 = arith.constant 0 : i32
    %c0_i32_1 = arith.constant 0 : i32
    return %c0_i32, %c0_i32_0 : i32, i32
  }
  func.func @transform_4(%arg0: i32) -> (i32, i32) {
    %c0_i32 = arith.constant 0 : i32
    %c0_i32_0 = arith.constant 0 : i32
    %c0_i32_1 = arith.constant 0 : i32
    return %c0_i32, %c0_i32_0 : i32, i32
  }
  func.func @transform_5(%arg0: i32) -> (i32, i32) {
    %c0_i32 = arith.constant 0 : i32
    %c0_i32_0 = arith.constant 0 : i32
    %c0_i32_1 = arith.constant 0 : i32
    return %c0_i32, %c0_i32_0 : i32, i32
  }
  func.func @transform_6(%arg0: i32) -> (i32, i32, i32) {
    %c0_i32 = arith.constant 0 : i32
    %c0_i32_0 = arith.constant 0 : i32
    %c0_i32_1 = arith.constant 0 : i32
    return %arg0, %c0_i32, %c0_i32_0 : i32, i32, i32
  }
}

</mosaic_0001>

<llo_original>
// kernel: bigram_forward_logits.1
$region0: #{bigram_forward_logits.1}
  #allocation0 [shape = 'u32[]', space=smem, size = 0x4, offset = 0x4, fixed_abs, tag = 'smem constant byte address 0x4 - core index']
  #allocation1 [shape = 'u32[144,128]{1,0:T(1,128)}', space=vmem, size = 0x12000, scoped, tag = 'internal scratch']
  %s0 = inlined_call_operand.vmem [shape: s32[16,1], index: 0, kind: input, shape index: {}]
  %s1 = inlined_call_operand.vmem [shape: bf16[65,32], index: 1, kind: input, shape index: {}]
  %s2 = inlined_call_operand.vmem [shape: f32[8,32], index: 2, kind: input, shape index: {}]
  %s3 = inlined_call_operand.vmem [shape: bf16[32,96], index: 3, kind: input, shape index: {}]
  %s4 = inlined_call_operand.vmem [shape: bf16[32,128], index: 4, kind: input, shape index: {}]
  %s5 = inlined_call_operand.vmem [shape: f32[1,128], index: 5, kind: input, shape index: {}]
  %s6 = inlined_call_operand.hbm [shape: f32[2,8,128], index: 6, kind: output, shape index: {}]
  %s7 = sld [smem:[#allocation0]]
  $region34: #{bigram_forward_logits.1} parent=0
    _
  %s9 = ssub.s32 1, %s7
  %s10 = scalar_select 0, %s9, %s7
  $region1: #{bigram_forward_logits.1} parent=0
    #allocation2 [shape = 'u8[8192]{0}', space=vmem, size = 0x2000, scoped, tag = 'output window, operand 0, single buffered']
    #allocation3 [shape = 's32[1]{0}', space=sflag, size = 0x4, scoped, tag = 'scoped memory for bigram_forward_logits.1']
    %11 = vsyncpa [#allocation3], 0
    // Predicated region
    $region2: #{bigram_forward_logits.1} parent=1 // pred_check
      _
    $region3: #{bigram_forward_logits.1} parent=1 // pred_check_branch
      %13 = sbr.rel (0) target = $region5
    $region4: #{bigram_forward_logits.1} parent=1 // pred_region
      _
    $region5: #{bigram_forward_logits.1} parent=1 // pred_fallthru
      _
    // Predicated region
    $region6: #{bigram_forward_logits.1} parent=1 // pred_check
      _
    $region7: #{bigram_forward_logits.1} parent=1 // pred_check_branch
      %15 = sbr.rel (0) target = $region9
    $region8: #{bigram_forward_logits.1} parent=1 // pred_region
      _
    $region9: #{bigram_forward_logits.1} parent=1 // pred_fallthru
      _
    // Predicated region
    $region10: #{bigram_forward_logits.1} parent=1 // pred_check
      _
    $region11: #{bigram_forward_logits.1} parent=1 // pred_check_branch
      %17 = sbr.rel (0) target = $region13
    $region12: #{bigram_forward_logits.1} parent=1 // pred_region
      _
    $region13: #{bigram_forward_logits.1} parent=1 // pred_fallthru
      _
    // Predicated region
    $region14: #{bigram_forward_logits.1} parent=1 // pred_check
      _
    $region15: #{bigram_forward_logits.1} parent=1 // pred_check_branch
      %19 = sbr.rel (0) target = $region17
    $region16: #{bigram_forward_logits.1} parent=1 // pred_region
      _
    $region17: #{bigram_forward_logits.1} parent=1 // pred_fallthru
      _
    // Predicated region
    $region18: #{bigram_forward_logits.1} parent=1 // pred_check
      _
    $region19: #{bigram_forward_logits.1} parent=1 // pred_check_branch
      %21 = sbr.rel (0) target = $region21
    $region20: #{bigram_forward_logits.1} parent=1 // pred_region
      _
    $region21: #{bigram_forward_logits.1} parent=1 // pred_fallthru
      _
    // Predicated region
    $region22: #{bigram_forward_logits.1} parent=1 // pred_check
      _
    $region23: #{bigram_forward_logits.1} parent=1 // pred_check_branch
      %23 = sbr.rel (0) target = $region25
    $region24: #{bigram_forward_logits.1} parent=1 // pred_region
      _
    $region25: #{bigram_forward_logits.1} parent=1 // pred_fallthru
      _
    %v25 = vld [vmem:[%s0] sm:$0xff]
    %v26 = vld [vmem:[%s0 + $0x8] sm:$0xff]
    %v27 = vlaneseq
    %v28 = vand.u32 %v27, 127
    %29 = vset.pattern.permute.xlu0 0
    %30 = vperm.xlu0 %29, %v25
    %v31 = vpop.permute.xlu0 %30
    %32 = vset.pattern.permute.xlu0 0
    %33 = vperm.xlu0 %32, %v26
    %v34 = vpop.permute.xlu0 %33
    %vm35 = vcmp.eq.s32.totalorder %v28, %v31
    %vm36 = vcmp.eq.s32.totalorder %v28, %v34
    %v37 = vsel %vm35, 1, 0
    %v38 = vsel %vm36, 1, 0
    %v39 = vcvt.s32.f32 %v37
    %v40 = vcvt.s32.f32 %v38
    %v41 = vpack.c.bf16 %v40, %v39
    %v42 = vld [vmem:[%s1] sm:$0xf]
    %v43 = vld [vmem:[%s1 + $0x4] sm:$0xf]
    %v44 = vld [vmem:[%s1 + $0x8] sm:$0xf]
    %v45 = vld [vmem:[%s1 + $0xc] sm:$0xf]
    %v46 = vld [vmem:[%s1 + $0x10] sm:$0xf]
    %v47 = vld [vmem:[%s1 + $0x14] sm:$0xf]
    %v48 = vld [vmem:[%s1 + $0x18] sm:$0xf]
    %v49 = vld [vmem:[%s1 + $0x1c] sm:$0xf]
    %v50 = vld [vmem:[%s1 + $0x20] sm:$0x1]
    %v60 = vunpack.c.l.b16 %v42
    %v61 = vunpack.c.l.b16 %v43
    %v62 = vunpack.c.l.b16 %v44
    %v63 = vunpack.c.l.b16 %v45
    %v64 = vunpack.c.l.b16 %v46
    %v65 = vunpack.c.l.b16 %v47
    %v66 = vunpack.c.l.b16 %v48
    %v67 = vunpack.c.l.b16 %v49
    %v68 = vunpack.c.l.b16 %v50
    %v69 = vpack.c.b16 %v61, %v60
    %v70 = vpack.c.b16 %v63, %v62
    %v71 = vpack.c.b16 %v65, %v64
    %v72 = vpack.c.b16 %v67, %v66
    %v73 = vpack.c.b16 %v68, %v68
    %vm78 = vcmask 531456
    %v80 = vsel %vm78, %v41, 0
    %vm82 = vcmask 1040384
    %v83 = vsel 0, 4294967295, 65535
    %v84 = vsel %vm82, %v83, 0
    %v86 = vand.u32 %v73, %v84
    %88 = vmatprep.subr.bf16.mxu0 0
    %89 = vmatpush1.bf16.msra.mxu0 %v69
    %90 = vmatprep.subr.bf16.mxu0 0
    %91 = vmatpush1.bf16.msra.mxu0 %v70
    %92 = vmatprep.subr.bf16.mxu0 0
    %93 = vmatpush1.bf16.msra.mxu0 %v71
    %94 = vmatprep.subr.bf16.mxu0 0
    %95 = vmatpush1.bf16.msra.mxu0 %v72
    %96 = vmatprep.subr.bf16.mxu0 0
    %97 = vmatpush1.bf16.msra.mxu0 %v86
    %98 = vmatprep.subr.bf16.mxu0 0
    %99 = vmatpush1.bf16.msra.mxu0 0
    %100 = vmatprep.subr.bf16.mxu0 0
    %101 = vmatpush1.bf16.msra.mxu0 0
    %102 = vmatprep.subr.bf16.mxu0 0
    %103 = vmatpush1.bf16.msra.mxu0 0
    %104 = vmatprep.subr.bf16.mxu0 0
    %105 = vmatpush1.bf16.msra.mxu0 0
    %106 = vmatprep.subr.bf16.mxu0 0
    %107 = vmatpush1.bf16.msra.mxu0 0
    %108 = vmatprep.subr.bf16.mxu0 0
    %109 = vmatpush1.bf16.msra.mxu0 0
    %110 = vmatprep.subr.bf16.mxu0 0
    %111 = vmatpush1.bf16.msra.mxu0 0
    %112 = vmatprep.subr.bf16.mxu0 0
    %113 = vmatpush1.bf16.msra.mxu0 0
    %114 = vmatprep.subr.bf16.mxu0 0
    %115 = vmatpush1.bf16.msra.mxu0 0
    %116 = vmatprep.subr.bf16.mxu0 0
    %117 = vmatpush1.bf16.msra.mxu0 0
    %118 = vmatprep.subr.bf16.mxu0 0
    %119 = vmatpush1.bf16.msra.mxu0 0
    %120 = vmatprep.mubr.bf16.mxu0 0
    %121 = vmatmul.mubr.bf16.gmra.mrb[0].mxu0 %v80
    %v122 = vpop.f32.mrb[0].mxu0
    %v123 = vadd.f32 0.0, %v122
    %v124 = vpop.f32.mrb[0].mxu0
    %v125 = vpop.f32.mrb[0].mxu0
    %v126 = vadd.f32 0.0, %v125
    %v127 = vpop.f32.mrb[0].mxu0
    %128 = vdwg.mxu0
    %v129 = vld [vmem:[%s2] sm:$0xff]
    %v130 = vadd.f32 %v123, %v129
    %v131 = vadd.f32 %v126, %v129
    %v132 = vpack.c.bf16 %v131, %v130
    %v133 = vld [vmem:[%s3] sm:$0xf]
    %v134 = vld [vmem:[%s3 + $0x4] sm:$0xf]
    %v135 = vld [vmem:[%s3 + $0x8] sm:$0xf]
    %v136 = vld [vmem:[%s3 + $0xc] sm:$0xf]
    %v141 = vunpack.c.l.b16 %v133
    %v142 = vunpack.c.l.b16 %v134
    %v143 = vunpack.c.l.b16 %v135
    %v144 = vunpack.c.l.b16 %v136
    %v145 = vpack.c.b16 %v142, %v141
    %v146 = vpack.c.b16 %v144, %v143
    %vm149 = vcmask 261120
    %v151 = vsel %vm149, %v132, 0
    %153 = vmatprep.subr.bf16.mxu0 0
    %154 = vmatpush1.bf16.msra.mxu0 %v145
    %155 = vmatprep.subr.bf16.mxu0 0
    %156 = vmatpush1.bf16.msra.mxu0 %v146
    %157 = vmatprep.subr.bf16.mxu0 0
    %158 = vmatpush1.bf16.msra.mxu0 0
    %159 = vmatprep.subr.bf16.mxu0 0
    %160 = vmatpush1.bf16.msra.mxu0 0
    %161 = vmatprep.subr.bf16.mxu0 0
    %162 = vmatpush1.bf16.msra.mxu0 0
    %163 = vmatprep.subr.bf16.mxu0 0
    %164 = vmatpush1.bf16.msra.mxu0 0
    %165 = vmatprep.subr.bf16.mxu0 0
    %166 = vmatpush1.bf16.msra.mxu0 0
    %167 = vmatprep.subr.bf16.mxu0 0
    %168 = vmatpush1.bf16.msra.mxu0 0
    %169 = vmatprep.subr.bf16.mxu0 0
    %170 = vmatpush1.bf16.msra.mxu0 0
    %171 = vmatprep.subr.bf16.mxu0 0
    %172 = vmatpush1.bf16.msra.mxu0 0
    %173 = vmatprep.subr.bf16.mxu0 0
    %174 = vmatpush1.bf16.msra.mxu0 0
    %175 = vmatprep.subr.bf16.mxu0 0
    %176 = vmatpush1.bf16.msra.mxu0 0
    %177 = vmatprep.subr.bf16.mxu0 0
    %178 = vmatpush1.bf16.msra.mxu0 0
    %179 = vmatprep.subr.bf16.mxu0 0
    %180 = vmatpush1.bf16.msra.mxu0 0
    %181 = vmatprep.subr.bf16.mxu0 0
    %182 = vmatpush1.bf16.msra.mxu0 0
    %183 = vmatprep.subr.bf16.mxu0 0
    %184 = vmatpush1.bf16.msra.mxu0 0
    %185 = vmatprep.mubr.bf16.mxu0 0
    %186 = vmatmul.mubr.bf16.gmra.mrb[0].mxu0 %v151
    %v187 = vpop.f32.mrb[0].mxu0
    %v188 = vadd.f32 0.0, %v187
    %v189 = vpop.f32.mrb[0].mxu0
    %v190 = vpop.f32.mrb[0].mxu0
    %v191 = vadd.f32 0.0, %v190
    %v192 = vpop.f32.mrb[0].mxu0
    %193 = vdwg.mxu0
    %v194 = vpack.c.bf16 %v188, %v188
    %v195 = vpack.c.bf16 %v191, %v191
    %197 = vrot.lane.b32.xlu0 %v194, 96
    %v198 = vpop.permute.xlu0 %197
    %v200 = vsel %vm149, %v198, 0
    %v203 = vsel %vm149, %v194, 0
    %205 = vmatprep.subr.bf16.mxu0 0
    %206 = vmatpush1.bf16.xpose.msra.mxu0 %v203
    %207 = vmatprep.subr.bf16.mxu0 0
    %208 = vmatpush1.bf16.xpose.msra.mxu0 0
    %209 = vmatprep.subr.bf16.mxu0 0
    %210 = vmatpush1.bf16.xpose.msra.mxu0 0
    %211 = vmatprep.subr.bf16.mxu0 0
    %212 = vmatpush1.bf16.xpose.msra.mxu0 0
    %213 = vmatprep.subr.bf16.mxu0 0
    %214 = vmatpush1.bf16.xpose.msra.mxu0 0
    %215 = vmatprep.subr.bf16.mxu0 0
    %216 = vmatpush1.bf16.xpose.msra.mxu0 0
    %217 = vmatprep.subr.bf16.mxu0 0
    %218 = vmatpush1.bf16.xpose.msra.mxu0 0
    %219 = vmatprep.subr.bf16.mxu0 0
    %220 = vmatpush1.bf16.xpose.msra.mxu0 0
    %221 = vmatprep.subr.bf16.mxu0 0
    %222 = vmatpush1.bf16.xpose.msra.mxu0 0
    %223 = vmatprep.subr.bf16.mxu0 0
    %224 = vmatpush1.bf16.xpose.msra.mxu0 0
    %225 = vmatprep.subr.bf16.mxu0 0
    %226 = vmatpush1.bf16.xpose.msra.mxu0 0
    %227 = vmatprep.subr.bf16.mxu0 0
    %228 = vmatpush1.bf16.xpose.msra.mxu0 0
    %229 = vmatprep.subr.bf16.mxu0 0
    %230 = vmatpush1.bf16.xpose.msra.mxu0 0
    %231 = vmatprep.subr.bf16.mxu0 0
    %232 = vmatpush1.bf16.xpose.msra.mxu0 0
    %233 = vmatprep.subr.bf16.mxu0 0
    %234 = vmatpush1.bf16.xpose.msra.mxu0 0
    %235 = vmatprep.subr.bf16.mxu0 0
    %236 = vmatpush1.bf16.xpose.msra.mxu0 0
    %237 = vmatprep.mubr.bf16.mxu0 0
    %238 = vmatmul.mubr.bf16.gmra.mrb[0].mxu0 %v200
    %v239 = vpop.f32.mrb[0].mxu0
    %v240 = vadd.f32 0.0, %v239
    %v241 = vpop.f32.mrb[0].mxu0
    %v242 = vpop.f32.mrb[0].mxu0
    %v243 = vpop.f32.mrb[0].mxu0
    %244 = vdwg.mxu0
    %246 = vrot.lane.b32.xlu0 %v195, 96
    %v247 = vpop.permute.xlu0 %246
    %v249 = vsel %vm149, %v247, 0
    %v252 = vsel %vm149, %v195, 0
    %254 = vmatprep.subr.bf16.mxu0 0
    %255 = vmatpush1.bf16.xpose.msra.mxu0 %v252
    %256 = vmatprep.subr.bf16.mxu0 0
    %257 = vmatpush1.bf16.xpose.msra.mxu0 0
    %258 = vmatprep.subr.bf16.mxu0 0
    %259 = vmatpush1.bf16.xpose.msra.mxu0 0
    %260 = vmatprep.subr.bf16.mxu0 0
    %261 = vmatpush1.bf16.xpose.msra.mxu0 0
    %262 = vmatprep.subr.bf16.mxu0 0
    %263 = vmatpush1.bf16.xpose.msra.mxu0 0
    %264 = vmatprep.subr.bf16.mxu0 0
    %265 = vmatpush1.bf16.xpose.msra.mxu0 0
    %266 = vmatprep.subr.bf16.mxu0 0
    %267 = vmatpush1.bf16.xpose.msra.mxu0 0
    %268 = vmatprep.subr.bf16.mxu0 0
    %269 = vmatpush1.bf16.xpose.msra.mxu0 0
    %270 = vmatprep.subr.bf16.mxu0 0
    %271 = vmatpush1.bf16.xpose.msra.mxu0 0
    %272 = vmatprep.subr.bf16.mxu0 0
    %273 = vmatpush1.bf16.xpose.msra.mxu0 0
    %274 = vmatprep.subr.bf16.mxu0 0
    %275 = vmatpush1.bf16.xpose.msra.mxu0 0
    %276 = vmatprep.subr.bf16.mxu0 0
    %277 = vmatpush1.bf16.xpose.msra.mxu0 0
    %278 = vmatprep.subr.bf16.mxu0 0
    %279 = vmatpush1.bf16.xpose.msra.mxu0 0
    %280 = vmatprep.subr.bf16.mxu0 0
    %281 = vmatpush1.bf16.xpose.msra.mxu0 0
    %282 = vmatprep.subr.bf16.mxu0 0
    %283 = vmatpush1.bf16.xpose.msra.mxu0 0
    %284 = vmatprep.subr.bf16.mxu0 0
    %285 = vmatpush1.bf16.xpose.msra.mxu0 0
    %286 = vmatprep.mubr.bf16.mxu0 0
    %287 = vmatmul.mubr.bf16.gmra.mrb[0].mxu0 %v249
    %v288 = vpop.f32.mrb[0].mxu0
    %v289 = vadd.f32 0.0, %v288
    %v290 = vpop.f32.mrb[0].mxu0
    %v291 = vpop.f32.mrb[0].mxu0
    %v292 = vpop.f32.mrb[0].mxu0
    %293 = vdwg.mxu0
    %v294 = vmul.f32 %v240, 0.17677669
    %v295 = vmul.f32 %v289, 0.17677669
    %v296 = vlaneseq
    %v297 = vshrl.u32 %v296, 7
    %vm298 = vcmp.le.s32.totalorder %v28, %v297
    %v299 = vsel %vm298, %v294, -1e+30
    %v300 = vsel %vm298, %v295, -1e+30
    %vm301 = vcmask 64512
    %v302 = vsel %vm301, %v299, -inf
    %303 = vmax.xlane.f32.xlu0 %v302
    %v304 = vpop.xlane.xlu0 %303
    %v305 = vsel %vm301, %v300, -inf
    %306 = vmax.xlane.f32.xlu0 %v305
    %v307 = vpop.xlane.xlu0 %306
    %v308 = vsub.f32 %v299, %v304
    %v309 = vsub.f32 %v300, %v307
    %v310 = vmul.f32 %v308, 1.442695
    %v311 = vpow.pop %v310
    %v312 = vmul.f32 %v309, 1.442695
    %v313 = vpow.pop %v312
    %v314 = vsel %vm301, %v311, 0.0
    %315 = vadd.xlane.f32.xlu0 %v314
    %v316 = vpop.xlane.xlu0 %315
    %v317 = vsel %vm301, %v313, 0.0
    %318 = vadd.xlane.f32.xlu0 %v317
    %v319 = vpop.xlane.xlu0 %318
    %v320 = vrcp.pop %v316
    %v321 = vrcp.pop %v319
    %v322 = vmul.f32 %v311, %v320
    %v323 = vmul.f32 %v313, %v321
    %v324 = vpack.c.bf16 %v322, %v322
    %v325 = vpack.c.bf16 %v323, %v323
    %326 = vrot.lane.b32.xlu0 %v194, 64
    %v327 = vpop.permute.xlu0 %326
    %v329 = vsel %vm301, %v324, 0
    %vm331 = vcmask 1043456
    %v333 = vsel %vm331, %v327, 0
    %335 = vmatprep.subr.bf16.mxu0 0
    %336 = vmatpush1.bf16.msra.mxu0 %v333
    %337 = vmatprep.subr.bf16.mxu0 0
    %338 = vmatpush1.bf16.msra.mxu0 0
    %339 = vmatprep.subr.bf16.mxu0 0
    %340 = vmatpush1.bf16.msra.mxu0 0
    %341 = vmatprep.subr.bf16.mxu0 0
    %342 = vmatpush1.bf16.msra.mxu0 0
    %343 = vmatprep.subr.bf16.mxu0 0
    %344 = vmatpush1.bf16.msra.mxu0 0
    %345 = vmatprep.subr.bf16.mxu0 0
    %346 = vmatpush1.bf16.msra.mxu0 0
    %347 = vmatprep.subr.bf16.mxu0 0
    %348 = vmatpush1.bf16.msra.mxu0 0
    %349 = vmatprep.subr.bf16.mxu0 0
    %350 = vmatpush1.bf16.msra.mxu0 0
    %351 = vmatprep.subr.bf16.mxu0 0
    %352 = vmatpush1.bf16.msra.mxu0 0
    %353 = vmatprep.subr.bf16.mxu0 0
    %354 = vmatpush1.bf16.msra.mxu0 0
    %355 = vmatprep.subr.bf16.mxu0 0
    %356 = vmatpush1.bf16.msra.mxu0 0
    %357 = vmatprep.subr.bf16.mxu0 0
    %358 = vmatpush1.bf16.msra.mxu0 0
    %359 = vmatprep.subr.bf16.mxu0 0
    %360 = vmatpush1.bf16.msra.mxu0 0
    %361 = vmatprep.subr.bf16.mxu0 0
    %362 = vmatpush1.bf16.msra.mxu0 0
    %363 = vmatprep.subr.bf16.mxu0 0
    %364 = vmatpush1.bf16.msra.mxu0 0
    %365 = vmatprep.subr.bf16.mxu0 0
    %366 = vmatpush1.bf16.msra.mxu0 0
    %367 = vmatprep.mubr.bf16.mxu0 0
    %368 = vmatmul.mubr.bf16.gmra.mrb[0].mxu0 %v329
    %v369 = vpop.f32.mrb[0].mxu0
    %v370 = vadd.f32 0.0, %v369
    %v371 = vpop.f32.mrb[0].mxu0
    %v372 = vpop.f32.mrb[0].mxu0
    %v373 = vpop.f32.mrb[0].mxu0
    %374 = vdwg.mxu0
    %375 = vrot.lane.b32.xlu0 %v195, 64
    %v376 = vpop.permute.xlu0 %375
    %v378 = vsel %vm301, %v325, 0
    %v381 = vsel %vm331, %v376, 0
    %383 = vmatprep.subr.bf16.mxu0 0
    %384 = vmatpush1.bf16.msra.mxu0 %v381
    %385 = vmatprep.subr.bf16.mxu0 0
    %386 = vmatpush1.bf16.msra.mxu0 0
    %387 = vmatprep.subr.bf16.mxu0 0
    %388 = vmatpush1.bf16.msra.mxu0 0
    %389 = vmatprep.subr.bf16.mxu0 0
    %390 = vmatpush1.bf16.msra.mxu0 0
    %391 = vmatprep.subr.bf16.mxu0 0
    %392 = vmatpush1.bf16.msra.mxu0 0
    %393 = vmatprep.subr.bf16.mxu0 0
    %394 = vmatpush1.bf16.msra.mxu0 0
    %395 = vmatprep.subr.bf16.mxu0 0
    %396 = vmatpush1.bf16.msra.mxu0 0
    %397 = vmatprep.subr.bf16.mxu0 0
    %398 = vmatpush1.bf16.msra.mxu0 0
    %399 = vmatprep.subr.bf16.mxu0 0
    %400 = vmatpush1.bf16.msra.mxu0 0
    %401 = vmatprep.subr.bf16.mxu0 0
    %402 = vmatpush1.bf16.msra.mxu0 0
    %403 = vmatprep.subr.bf16.mxu0 0
    %404 = vmatpush1.bf16.msra.mxu0 0
    %405 = vmatprep.subr.bf16.mxu0 0
    %406 = vmatpush1.bf16.msra.mxu0 0
    %407 = vmatprep.subr.bf16.mxu0 0
    %408 = vmatpush1.bf16.msra.mxu0 0
    %409 = vmatprep.subr.bf16.mxu0 0
    %410 = vmatpush1.bf16.msra.mxu0 0
    %411 = vmatprep.subr.bf16.mxu0 0
    %412 = vmatpush1.bf16.msra.mxu0 0
    %413 = vmatprep.subr.bf16.mxu0 0
    %414 = vmatpush1.bf16.msra.mxu0 0
    %415 = vmatprep.mubr.bf16.mxu0 0
    %416 = vmatmul.mubr.bf16.gmra.mrb[0].mxu0 %v378
    %v417 = vpop.f32.mrb[0].mxu0
    %v418 = vadd.f32 0.0, %v417
    %v419 = vpop.f32.mrb[0].mxu0
    %v420 = vpop.f32.mrb[0].mxu0
    %v421 = vpop.f32.mrb[0].mxu0
    %422 = vdwg.mxu0
    %v423 = vpack.c.bf16 %v418, %v370
    %v424 = vld [vmem:[%s4] sm:$0xf]
    %v425 = vld [vmem:[%s4 + $0x4] sm:$0xf]
    %v426 = vld [vmem:[%s4 + $0x8] sm:$0xf]
    %v427 = vld [vmem:[%s4 + $0xc] sm:$0xf]
    %v428 = vld [vmem:[%s5] sm:$0x1]
    %v430 = vlaneseq
    %v431 = vshrl.u32 %v430, 7
    %v432 = vsub.s32 0, %v431
    %v433 = vrot.slane %v428, %v432
    %v439 = vunpack.c.l.b16 %v424
    %v440 = vunpack.c.l.b16 %v425
    %v441 = vunpack.c.l.b16 %v426
    %v442 = vunpack.c.l.b16 %v427
    %v443 = vpack.c.b16 %v440, %v439
    %v444 = vpack.c.b16 %v442, %v441
    %v448 = vsel %vm149, %v423, 0
    %450 = vmatprep.subr.bf16.mxu0 0
    %451 = vmatpush1.bf16.msra.mxu0 %v443
    %452 = vmatprep.subr.bf16.mxu0 0
    %453 = vmatpush1.bf16.msra.mxu0 %v444
    %454 = vmatprep.subr.bf16.mxu0 0
    %455 = vmatpush1.bf16.msra.mxu0 0
    %456 = vmatprep.subr.bf16.mxu0 0
    %457 = vmatpush1.bf16.msra.mxu0 0
    %458 = vmatprep.subr.bf16.mxu0 0
    %459 = vmatpush1.bf16.msra.mxu0 0
    %460 = vmatprep.subr.bf16.mxu0 0
    %461 = vmatpush1.bf16.msra.mxu0 0
    %462 = vmatprep.subr.bf16.mxu0 0
    %463 = vmatpush1.bf16.msra.mxu0 0
    %464 = vmatprep.subr.bf16.mxu0 0
    %465 = vmatpush1.bf16.msra.mxu0 0
    %466 = vmatprep.subr.bf16.mxu0 0
    %467 = vmatpush1.bf16.msra.mxu0 0
    %468 = vmatprep.subr.bf16.mxu0 0
    %469 = vmatpush1.bf16.msra.mxu0 0
    %470 = vmatprep.subr.bf16.mxu0 0
    %471 = vmatpush1.bf16.msra.mxu0 0
    %472 = vmatprep.subr.bf16.mxu0 0
    %473 = vmatpush1.bf16.msra.mxu0 0
    %474 = vmatprep.subr.bf16.mxu0 0
    %475 = vmatpush1.bf16.msra.mxu0 0
    %476 = vmatprep.subr.bf16.mxu0 0
    %477 = vmatpush1.bf16.msra.mxu0 0
    %478 = vmatprep.subr.bf16.mxu0 0
    %479 = vmatpush1.bf16.msra.mxu0 0
    %480 = vmatprep.subr.bf16.mxu0 0
    %481 = vmatpush1.bf16.msra.mxu0 0
    %482 = vmatprep.mubr.bf16.mxu0 0
    %483 = vmatmul.mubr.bf16.gmra.mrb[0].mxu0 %v448
    %v484 = vpop.f32.mrb[0].mxu0
    %v485 = vadd.f32 %v433, %v484
    %v486 = vpop.f32.mrb[0].mxu0
    %v487 = vpop.f32.mrb[0].mxu0
    %v488 = vadd.f32 %v433, %v487
    %v489 = vpop.f32.mrb[0].mxu0
    %490 = vdwg.mxu0
    %491 = vst [vmem:[#allocation2] sm:$0xff] %v485
    %492 = vst [vmem:[#allocation2 + $0x8] sm:$0xff] %v488
    // Predicated region
    $region26: #{bigram_forward_logits.1} parent=1 // pred_check
      _
    $region27: #{bigram_forward_logits.1} parent=1 // pred_check_branch
      %494 = sbr.rel (0) target = $region29
    $region28: #{bigram_forward_logits.1} parent=1 // pred_region
      %s496 = ssub.s32 256, 256
      %497 = vsyncadd [#allocation3], %s496
      %s498 = sshll.u32 [#allocation2], 4
      %s499 = int_to_ptr.vmem [resolvable:$true] %s498
      %504 = dma.vmem_to_hbm [thread:$0]  %s499, 256, %s6, [#allocation3], 128, 128, 8
    $region29: #{bigram_forward_logits.1} parent=1 // pred_fallthru
      _
    // Predicated region
    $region30: #{bigram_forward_logits.1} parent=1 // pred_check
      _
    $region31: #{bigram_forward_logits.1} parent=1 // pred_check_branch
      %506 = sbr.rel (0) target = $region33
    $region32: #{bigram_forward_logits.1} parent=1 // pred_region
      %507 = dma.done [#allocation3], 256
    $region33: #{bigram_forward_logits.1} parent=1 // pred_fallthru
      _
    %508 = vsyncpa [#allocation3], 1

</llo_original>
